<compile_context>
chip_gen: v7x
topology: tpu7x:2x2x1
jax: 0.10.0
libtpu: 0.0.40
codegen_flags: <defaults>
</compile_context>

<pallas_src>
import jax
import jax.numpy as jnp
from jax.experimental import pallas as pl
from jax.experimental.pallas import tpu as pltpu


def _film_kernel(emb_ref, cw_ref, cb_ref, x_ref, o_ref, film_ref):
    # Compute the 1x1 conv (FiLM coefficients) once per batch element.
    @pl.when(pl.program_id(1) == 0)
    def _():
        emb = emb_ref[0]                                           # (D, F_emb)
        film = jnp.dot(cw_ref[...], emb,
                       preferred_element_type=jnp.float32) + cb_ref[...]  # (CO, F_emb)
        # Same row-major reshape as torch's .reshape(B, C, F, 1); no-op when nF == 1.
        film_ref[...] = film.reshape(film_ref.shape)

    wv = film_ref[...][:, :, None]                                 # (C, F, 1)
    x = x_ref[0]                                                   # (D, F, t_tile)
    # PyTorch module uses self.weight for both w and b, so out = x * w + w.
    o_ref[0] = (x * wv + wv).astype(o_ref.dtype)


def _pick_t_tile(T, col_bytes, budget_bytes=4 << 20):
    """Largest lane-dense T tile: multiple of 128, divides T, tile <= budget."""
    if T % 128 != 0:
        # Fall back to the full T extent (the Pallas (8,128) rule only allows a
        # non-multiple-of-128 last block dim when it spans the full dim).
        return T
    best = 128
    t = 128
    while t <= min(T, 2048):
        if T % t == 0 and t * col_bytes <= budget_bytes:
            best = t
        t += 128
    return best


def film_forward(x, embedding, conv_w, conv_b, *, C, nF, t_tile=None):
    """x: (B, D, F, T), embedding: (B, D, F_emb) -> (B, D, F, T)."""
    B, D, F, T = x.shape
    _, _, F_emb = embedding.shape
    CO = C * nF
    assert conv_w.shape == (CO, D)
    assert conv_b.shape == (CO,)
    assert CO * F_emb == C * F, "reshape to (B, C, F, 1) must be valid"
    # The reference broadcast x * (B, C, F, 1) requires C == D (or C == 1).
    assert C == D or C == 1, "x*(B,C,F,1) broadcast needs C == D (or C == 1)"

    dtype_bytes = jnp.dtype(x.dtype).itemsize
    if t_tile is None:
        t_tile = _pick_t_tile(T, D * F * dtype_bytes)
    assert T % t_tile == 0
    n_t = T // t_tile

    tile_bytes = D * F * t_tile * dtype_bytes
    # in-tile + out-tile double-buffered, plus the small conv operands, plus slack.
    vmem_limit = int(min(64 << 20, max(32 << 20, 5 * tile_bytes + (4 << 20))))

    # TODO(synk): if x is dead after this op, input_output_aliases={3: 0} would
    # let XLA reuse x's HBM buffer for the output (only a win when x is donated).
    return pl.pallas_call(
        _film_kernel,
        out_shape=jax.ShapeDtypeStruct((B, D, F, T), x.dtype),
        grid_spec=pltpu.PrefetchScalarGridSpec(
            num_scalar_prefetch=0,
            grid=(B, n_t),
            in_specs=[
                pl.BlockSpec((1, D, F_emb), lambda b, t: (b, 0, 0)),      # embedding
                pl.BlockSpec((CO, D), lambda b, t: (0, 0)),               # conv weight
                pl.BlockSpec((CO, 1), lambda b, t: (0, 0)),               # conv bias
                pl.BlockSpec((1, D, F, t_tile), lambda b, t: (b, 0, 0, t)),  # x
            ],
            out_specs=pl.BlockSpec((1, D, F, t_tile), lambda b, t: (b, 0, 0, t)),
            scratch_shapes=[pltpu.VMEM((C, F), jnp.float32)],
        ),
        compiler_params=pltpu.CompilerParams(
            dimension_semantics=("parallel", "arbitrary"),
            vmem_limit_bytes=vmem_limit),
    )(embedding, conv_w, conv_b.reshape(CO, 1), x)


def film_reference(x, embedding, conv_w, conv_b, *, C, nF):
    """Pure-JAX reference mirroring the PyTorch forward (including w == b)."""
    B, D, F, T = x.shape
    conv = jnp.einsum("od,bdl->bol", conv_w, embedding) + conv_b[None, :, None]
    w = conv.reshape(B, C, F, 1)
    b = w
    return x * w + b


if __name__ == "__main__":
    # Small shapes consistent with the forward: the x*(B,C,F,1) broadcast needs
    # C == D, and the reshape needs nF * F_emb == F  -> nF = 1, F_emb = F.
    # T is a multiple of 128 so the lane-dense T-tiling path is exercised.
    B, D, C, nF = 2, 8, 8, 1
    F, T = 16, 256
    CO = C * nF

    key = jax.random.PRNGKey(0)
    kx, ke, kw, kb, kw2, kb2 = jax.random.split(key, 6)

    x = jax.random.normal(kx, (B, D, F, T), dtype=jnp.float32)
    embedding = jax.random.normal(ke, (B, D, F), dtype=jnp.float32)

    # Deterministic Conv1d-style init (uniform +/- 1/sqrt(fan_in), fan_in = D*1).
    bound = 1.0 / jnp.sqrt(jnp.float32(D))
    weight_w = jax.random.uniform(kw, (CO, D), jnp.float32, -bound, bound)   # self.weight
    weight_b = jax.random.uniform(kb, (CO,), jnp.float32, -bound, bound)
    # self.bias conv parameters exist in __init__ but are never used in forward.
    _bias_w = jax.random.uniform(kw2, (CO, D), jnp.float32, -bound, bound)
    _bias_b = jax.random.uniform(kb2, (CO,), jnp.float32, -bound, bound)

    out = film_forward(x, embedding, weight_w, weight_b, C=C, nF=nF)
    out = jax.block_until_ready(out)

    ref = film_reference(x, embedding, weight_w, weight_b, C=C, nF=nF)
    assert out.shape == (B, D, F, T)
    assert jnp.allclose(out, ref, atol=1e-5, rtol=1e-5)

    print("KERNEL_OK")
</pallas_src>

<mosaic_0001>
module attributes {stable_mosaic.version = 11 : i64} {
  func.func @_film_kernel(%arg0: i32, %arg1: i32, %arg2: memref<1x8x16xf32, #tpu.memory_space<vmem>>, %arg3: memref<8x8xf32, #tpu.memory_space<vmem>>, %arg4: memref<8x1xf32, #tpu.memory_space<vmem>>, %arg5: memref<1x8x16x256xf32, #tpu.memory_space<vmem>>, %arg6: memref<1x8x16x256xf32, #tpu.memory_space<vmem>>, %arg7: memref<8x16xf32, #tpu.memory_space<vmem>>) attributes {dimension_semantics = [#tpu.dimension_semantics<parallel>, #tpu.dimension_semantics<arbitrary>], iteration_bounds = array<i64: 2, 1>, scalar_prefetch = 0 : i64, scratch_operands = 1 : i64, tpu.core_type = #tpu.core_type<tc>, window_params = [{transform_indices = @transform_0, window_bounds = array<i64: 1, 8, 16>}, {pipeline_mode = #tpu.pipeline_mode<synchronous>, transform_indices = @transform_1, window_bounds = array<i64: 8, 8>}, {pipeline_mode = #tpu.pipeline_mode<synchronous>, transform_indices = @transform_2, window_bounds = array<i64: 8, 1>}, {transform_indices = @transform_3, window_bounds = array<i64: 1, 8, 16, 256>}, {transform_indices = @transform_4, window_bounds = array<i64: 1, 8, 16, 256>}]} {
    %c0_i32 = arith.constant 0 : i32
    %0 = arith.cmpi eq, %arg1, %c0_i32 : i32
    %1 = arith.extui %0 : i1 to i32
    %c0_i32_0 = arith.constant 0 : i32
    %2 = arith.cmpi ne, %1, %c0_i32_0 : i32
    scf.if %2 {
      %c0_10 = arith.constant 0 : index
      %c0_11 = arith.constant 0 : index
      %c0_12 = arith.constant 0 : index
      %14 = vector.load %arg2[%c0_10, %c0_11, %c0_12] : memref<1x8x16xf32, #tpu.memory_space<vmem>>, vector<1x8x16xf32>
      %15 = vector.shape_cast %14 : vector<1x8x16xf32> to vector<8x16xf32>
      %c0_13 = arith.constant 0 : index
      %c0_14 = arith.constant 0 : index
      %16 = vector.load %arg3[%c0_13, %c0_14] : memref<8x8xf32, #tpu.memory_space<vmem>>, vector<8x8xf32>
      %cst = arith.constant dense<0.000000e+00> : vector<8x16xf32>
      %17 = tpu.matmul %16, %15, %cst {dimension_numbers = #tpu.dot_dimension_numbers<[1], [0], [0], [1], [0, 0, 1, 1], [], []>} : vector<8x8xf32>, vector<8x16xf32>, vector<8x16xf32> -> vector<8x16xf32>
      %c0_15 = arith.constant 0 : index
      %c0_16 = arith.constant 0 : index
      %18 = vector.load %arg4[%c0_15, %c0_16] : memref<8x1xf32, #tpu.memory_space<vmem>>, vector<8x1xf32>
      %19 = vector.broadcast %18 : vector<8x1xf32> to vector<8x16xf32>
      %20 = arith.addf %17, %19 : vector<8x16xf32>
      %c0_17 = arith.constant 0 : index
      %c0_18 = arith.constant 0 : index
      %21 = vector.load %arg7[%c0_17, %c0_18] : memref<8x16xf32, #tpu.memory_space<vmem>>, vector<8x16xf32>
      tpu.vector_store %arg7[%c0_17, %c0_18], %20 {strides = array<i32>} : memref<8x16xf32, #tpu.memory_space<vmem>>, vector<8x16xf32>,
    } else {
    }
    %c0 = arith.constant 0 : index
    %c0_1 = arith.constant 0 : index
    %3 = vector.load %arg7[%c0, %c0_1] : memref<8x16xf32, #tpu.memory_space<vmem>>, vector<8x16xf32>
    %4 = vector.shape_cast %3 : vector<8x16xf32> to vector<8x16x1xf32>
    %c0_2 = arith.constant 0 : index
    %c0_3 = arith.constant 0 : index
    %c0_4 = arith.constant 0 : index
    %c0_5 = arith.constant 0 : index
    %5 = vector.load %arg5[%c0_2, %c0_3, %c0_4, %c0_5] : memref<1x8x16x256xf32, #tpu.memory_space<vmem>>, vector<1x8x16x256xf32>
    %6 = vector.shape_cast %5 : vector<1x8x16x256xf32> to vector<8x16x256xf32>
    %7 = vector.broadcast %4 : vector<8x16x1xf32> to vector<8x16x256xf32>
    %8 = arith.mulf %6, %7 : vector<8x16x256xf32>
    %9 = vector.broadcast %4 : vector<8x16x1xf32> to vector<8x16x256xf32>
    %10 = arith.addf %8, %9 : vector<8x16x256xf32>
    %c0_6 = arith.constant 0 : index
    %c0_7 = arith.constant 0 : index
    %c0_8 = arith.constant 0 : index
    %c0_9 = arith.constant 0 : index
    %11 = vector.load %arg6[%c0_6, %c0_7, %c0_8, %c0_9] : memref<1x8x16x256xf32, #tpu.memory_space<vmem>>, vector<1x8x16x256xf32>
    %12 = vector.shape_cast %11 : vector<1x8x16x256xf32> to vector<8x16x256xf32>
    %13 = vector.shape_cast %10 : vector<8x16x256xf32> to vector<1x8x16x256xf32>
    tpu.vector_store %arg6[%c0_6, %c0_7, %c0_8, %c0_9], %13 {strides = array<i32>} : memref<1x8x16x256xf32, #tpu.memory_space<vmem>>, vector<1x8x16x256xf32>,
    return
  }
  func.func @transform_0(%arg0: i32, %arg1: i32) -> (i32, i32, i32) {
    %c0_i32 = arith.constant 0 : i32
    %c0_i32_0 = arith.constant 0 : i32
    %c0_i32_1 = arith.constant 0 : i32
    return %arg0, %c0_i32, %c0_i32_0 : i32, i32, i32
  }
  func.func @transform_1(%arg0: i32, %arg1: i32) -> (i32, i32) {
    %c0_i32 = arith.constant 0 : i32
    %c0_i32_0 = arith.constant 0 : i32
    %c0_i32_1 = arith.constant 0 : i32
    return %c0_i32, %c0_i32_0 : i32, i32
  }
  func.func @transform_2(%arg0: i32, %arg1: i32) -> (i32, i32) {
    %c0_i32 = arith.constant 0 : i32
    %c0_i32_0 = arith.constant 0 : i32
    %c0_i32_1 = arith.constant 0 : i32
    return %c0_i32, %c0_i32_0 : i32, i32
  }
  func.func @transform_3(%arg0: i32, %arg1: i32) -> (i32, i32, i32, i32) {
    %c0_i32 = arith.constant 0 : i32
    %c0_i32_0 = arith.constant 0 : i32
    %c0_i32_1 = arith.constant 0 : i32
    return %arg0, %c0_i32, %c0_i32_0, %arg1 : i32, i32, i32, i32
  }
  func.func @transform_4(%arg0: i32, %arg1: i32) -> (i32, i32, i32, i32) {
    %c0_i32 = arith.constant 0 : i32
    %c0_i32_0 = arith.constant 0 : i32
    %c0_i32_1 = arith.constant 0 : i32
    return %arg0, %c0_i32, %c0_i32_0, %arg1 : i32, i32, i32, i32
  }
}

</mosaic_0001>

<llo_original>
// kernel: tpu_custom_call.1
$region0: #{tpu_custom_call.1}
  #allocation0 [shape = 'u32[]', space=smem, size = 0x4, offset = 0x4, fixed_abs, tag = 'smem constant byte address 0x4 - core index']
  #allocation1 [shape = 'u32[144,128]{1,0:T(1,128)}', space=vmem, size = 0x12000, scoped, tag = 'internal scratch']
  #allocation2 [shape = 'f32[8,16]{1,0:T(8,128)}', space=vmem, size = 0x1000, scoped, tag = 'scratch operand']
  %s0 = inlined_call_operand.hbm [shape: f32[2,8,16], index: 0, kind: input, shape index: {}]
  %s1 = inlined_call_operand.vmem [shape: f32[8,8], index: 1, kind: input, shape index: {}]
  %s2 = inlined_call_operand.vmem [shape: f32[8,1], index: 2, kind: input, shape index: {}]
  %s3 = inlined_call_operand.hbm [shape: f32[2,8,16,256], index: 3, kind: input, shape index: {}]
  %s4 = inlined_call_operand.hbm [shape: f32[2,8,16,256], index: 4, kind: output, shape index: {}]
  %s5 = sld [smem:[#allocation0]]
  $region61: #{tpu_custom_call.1} parent=0
    _
  %s7 = ssub.s32 1, %s5
  %s8 = scalar_select 0, %s7, %s5
  $region1: #{tpu_custom_call.1} parent=0
    #allocation3 [shape = 'u8[8192]{0}', space=vmem, size = 0x2000, scoped, tag = 'input window, operand 0']
    #allocation4 [shape = 's32[2]{0}', space=sflag, size = 0x8, scoped, tag = 'scoped memory for tpu_custom_call.1']
    #allocation5 [shape = 's32[2]{0}', space=sflag, size = 0x8, scoped, tag = 'scoped memory for tpu_custom_call.1']
    #allocation6 [shape = 'u8[262144]{0}', space=vmem, size = 0x40000, scoped, tag = 'input window, operand 3']
    #allocation7 [shape = 's32[2]{0}', space=sflag, size = 0x8, scoped, tag = 'scoped memory for tpu_custom_call.1']
    #allocation8 [shape = 'u8[262144]{0}', space=vmem, size = 0x40000, scoped, tag = 'output window, operand 0']
    %9 = vsyncpa [#allocation4], 0
    %s10 = scalar_lea.sflag [#allocation4], 1
    %11 = vsyncpa %s10, 0
    %12 = vsyncpa [#allocation7], 0
    %s13 = scalar_lea.sflag [#allocation7], 1
    %14 = vsyncpa %s13, 0
    %15 = vsyncpa [#allocation5], 0
    %s16 = scalar_lea.sflag [#allocation5], 1
    %17 = vsyncpa %s16, 0
    loop: start=0, step=1, limit=4
    $region2: #{tpu_custom_call.1} parent=1 // loop_pre_header
      _
    $region3: #{tpu_custom_call.1} parent=1 // loop_header
      %s19 = sphi 0, %s23
      %p20 = scmp.ge.s32.totalorder %s19, 4
      %s26 = sphi 0, %s38
      %s27 = sphi 0, %s34
      %s28 = sphi 0, %s26
      %s29 = sphi 0, %s27
      %s30 = sphi 0, %s28
      %s31 = sphi 0, %s29
      %s41 = sphi 0, %s43
      %s44 = sphi 0, %s41
      %s45 = sphi 0, %s44
      %s61 = sphi 0, %s45
      %s65 = sphi 0, %s65
      %s67 = sphi 0, %s65
      %s68 = sphi 0, %s67
      %s82 = sphi 0, %s68
      %s86 = sphi 0, %s86
      %s88 = sphi 0, %s86
      %s89 = sphi 0, %s88
      %s103 = sphi 0, %s89
      %s111 = sphi 0, %s113
      %s114 = sphi 0, %s111
      %s115 = sphi 0, %s114
      %s131 = sphi 0, %s115
      %s139 = sphi 0, %s141
      %s142 = sphi 0, %s139
      %s143 = sphi 0, %s142
      %s159 = sphi 0, %s143
    $region4: #{tpu_custom_call.1} parent=1 // loop_header_branch
      %22 = sbr.rel (%p20) target = $region8
    $region5: #{tpu_custom_call.1} parent=1 // loop_body
      %s24 = ssub.s32 %s19, 1
      %s25 = ssub.s32 %s19, 2
      %s32 = sadd.s32 1, %s27
      %p33 = scmp.ge.s32.totalorder %s32, 1
      %s34 = scalar_select %p33, 0, %s32
      %s35 = sadd.s32 1, %s26
      %s36 = scalar_select %p33, %s35, %s26
      %p37 = scmp.ge.s32.totalorder %s36, 2
      %s38 = scalar_select %p37, 0, %s36
      %s39 = ssub.s32 %s26, %s38
      %p40 = scmp.eq.s32.totalorder %s39, 0
      %s42 = sadd.s32 %s41, 1
      %s43 = scalar_select %p40, %s41, %s42
      %p46 = pneg %p40
      %p47 = scmp.eq.s32.totalorder %s19, 1
      %p48 = por %p46, %p47
      %p49 = scmp.ne.s32.totalorder %s41, %s44
      %p50 = scmp.eq.s32.totalorder %s19, 0
      %p51 = por %p49, %p50
      %p52 = scmp.ne.s32.totalorder %s41, %s44
      %p53 = scmp.eq.s32.totalorder %s24, 1
      %p54 = por %p52, %p53
      %p55 = scmp.ne.s32.totalorder %s44, %s45
      %p56 = scmp.eq.s32.totalorder %s24, 0
      %p57 = por %p55, %p56
      %p58 = scmp.ne.s32.totalorder %s44, %s45
      %p59 = scmp.eq.s32.totalorder %s25, 1
      %p60 = por %p58, %p59
      %p62 = scmp.ne.s32.totalorder %s45, %s61
      %p63 = scmp.eq.s32.totalorder %s25, 0
      %p64 = por %p62, %p63
      %s66 = sadd.s32 %s65, 1
      %p69 = scmp.eq.s32.totalorder %s19, 1
      %p70 = scmp.ne.s32.totalorder %s65, %s67
      %p71 = scmp.eq.s32.totalorder %s19, 0
      %p72 = por %p70, %p71
      %p73 = scmp.ne.s32.totalorder %s65, %s67
      %p74 = scmp.eq.s32.totalorder %s24, 1
      %p75 = por %p73, %p74
      %p76 = scmp.ne.s32.totalorder %s67, %s68
      %p77 = scmp.eq.s32.totalorder %s24, 0
      %p78 = por %p76, %p77
      %p79 = scmp.ne.s32.totalorder %s67, %s68
      %p80 = scmp.eq.s32.totalorder %s25, 1
      %p81 = por %p79, %p80
      %p83 = scmp.ne.s32.totalorder %s68, %s82
      %p84 = scmp.eq.s32.totalorder %s25, 0
      %p85 = por %p83, %p84
      %s87 = sadd.s32 %s86, 1
      %p90 = scmp.eq.s32.totalorder %s19, 1
      %p91 = scmp.ne.s32.totalorder %s86, %s88
      %p92 = scmp.eq.s32.totalorder %s19, 0
      %p93 = por %p91, %p92
      %p94 = scmp.ne.s32.totalorder %s86, %s88
      %p95 = scmp.eq.s32.totalorder %s24, 1
      %p96 = por %p94, %p95
      %p97 = scmp.ne.s32.totalorder %s88, %s89
      %p98 = scmp.eq.s32.totalorder %s24, 0
      %p99 = por %p97, %p98
      %p100 = scmp.ne.s32.totalorder %s88, %s89
      %p101 = scmp.eq.s32.totalorder %s25, 1
      %p102 = por %p100, %p101
      %p104 = scmp.ne.s32.totalorder %s89, %s103
      %p105 = scmp.eq.s32.totalorder %s25, 0
      %p106 = por %p104, %p105
      %s107 = ssub.s32 %s26, %s38
      %s108 = ssub.s32 %s27, %s34
      %s109 = sor.u32 %s107, %s108
      %p110 = scmp.eq.s32.totalorder %s109, 0
      %s112 = sadd.s32 %s111, 1
      %s113 = scalar_select %p110, %s111, %s112
      %p116 = pneg %p110
      %p117 = scmp.eq.s32.totalorder %s19, 1
      %p118 = por %p116, %p117
      %p119 = scmp.ne.s32.totalorder %s111, %s114
      %p120 = scmp.eq.s32.totalorder %s19, 0
      %p121 = por %p119, %p120
      %p122 = scmp.ne.s32.totalorder %s111, %s114
      %p123 = scmp.eq.s32.totalorder %s24, 1
      %p124 = por %p122, %p123
      %p125 = scmp.ne.s32.totalorder %s114, %s115
      %p126 = scmp.eq.s32.totalorder %s24, 0
      %p127 = por %p125, %p126
      %p128 = scmp.ne.s32.totalorder %s114, %s115
      %p129 = scmp.eq.s32.totalorder %s25, 1
      %p130 = por %p128, %p129
      %p132 = scmp.ne.s32.totalorder %s115, %s131
      %p133 = scmp.eq.s32.totalorder %s25, 0
      %p134 = por %p132, %p133
      %s135 = ssub.s32 %s26, %s38
      %s136 = ssub.s32 %s27, %s34
      %s137 = sor.u32 %s135, %s136
      %p138 = scmp.eq.s32.totalorder %s137, 0
      %s140 = sadd.s32 %s139, 1
      %s141 = scalar_select %p138, %s139, %s140
      %p144 = pneg %p138
      %p145 = scmp.eq.s32.totalorder %s19, 1
      %p146 = por %p144, %p145
      %p147 = scmp.ne.s32.totalorder %s139, %s142
      %p148 = scmp.eq.s32.totalorder %s19, 0
      %p149 = por %p147, %p148
      %p150 = scmp.ne.s32.totalorder %s139, %s142
      %p151 = scmp.eq.s32.totalorder %s24, 1
      %p152 = por %p150, %p151
      %p153 = scmp.ne.s32.totalorder %s142, %s143
      %p154 = scmp.eq.s32.totalorder %s24, 0
      %p155 = por %p153, %p154
      %p156 = scmp.ne.s32.totalorder %s142, %s143
      %p157 = scmp.eq.s32.totalorder %s25, 1
      %p158 = por %p156, %p157
      %p160 = scmp.ne.s32.totalorder %s143, %s159
      %p161 = scmp.eq.s32.totalorder %s25, 0
      %p162 = por %p160, %p161
      %p163 = scmp.le.s32.totalorder 1, %s19
      %p164 = scmp.lt.s32.totalorder %s19, 3
      %p165 = pnand %p163, %p164
      %p166 = pneg %p165
      // Predicated region
      $region9: #{tpu_custom_call.1} parent=5 // pred_check
        _
      $region10: #{tpu_custom_call.1} parent=5 // pred_check_branch
        %168 = sbr.rel (%p165) target = $region12
      $region11: #{tpu_custom_call.1} parent=5 // pred_region
        %s169 = ssub.s32 %s19, 1
        // Predicated region
        $region13: #{tpu_custom_call.1} parent=11 // pred_check
          %p170 = pneg %p78
        $region14: #{tpu_custom_call.1} parent=11 // pred_check_branch
          %172 = sbr.rel (%p170) target = $region16
        $region15: #{tpu_custom_call.1} parent=11 // pred_region
          _
        $region16: #{tpu_custom_call.1} parent=11 // pred_fallthru
          _
        // Predicated region
        $region17: #{tpu_custom_call.1} parent=11 // pred_check
          %p173 = pneg %p99
        $region18: #{tpu_custom_call.1} parent=11 // pred_check_branch
          %175 = sbr.rel (%p173) target = $region20
        $region19: #{tpu_custom_call.1} parent=11 // pred_region
          _
        $region20: #{tpu_custom_call.1} parent=11 // pred_fallthru
          _
      $region12: #{tpu_custom_call.1} parent=5 // pred_fallthru
        _
      %p176 = scmp.lt.s32.totalorder %s19, 2
      // Predicated region
      $region21: #{tpu_custom_call.1} parent=5 // pred_check
        %p177 = pneg %p176
      $region22: #{tpu_custom_call.1} parent=5 // pred_check_branch
        %179 = sbr.rel (%p177) target = $region24
      $region23: #{tpu_custom_call.1} parent=5 // pred_region
        // Predicated region
        $region25: #{tpu_custom_call.1} parent=23 // pred_check
          %p180 = pneg %p51
        $region26: #{tpu_custom_call.1} parent=23 // pred_check_branch
          %182 = sbr.rel (%p180) target = $region28
        $region27: #{tpu_custom_call.1} parent=23 // pred_region
          %s183 = sand.u32 %s41, 1
          %s184 = scalar_lea.sflag [#allocation4], %s183
          %s185 = sand.u32 %s41, 1
          %s186 = smul.addr %s185, 8
          %s187 = scalar_lea.vmem [#allocation3], %s186
          %s189 = ssub.s32 128, 128
          %190 = vsyncadd %s184, %s189
          %s191 = smul.addr %s26, 128
          %s192 = scalar_lea.hbm %s0, %s191
          %s194 = sshll.u32 %s187, 4
          %s195 = int_to_ptr.vmem [resolvable:$true] %s194
          %197 = dma.hbm_to_vmem [thread:$0]  %s192, 128, %s195, %s184
        $region28: #{tpu_custom_call.1} parent=23 // pred_fallthru
          _
        // Predicated region
        $region29: #{tpu_custom_call.1} parent=23 // pred_check
          %p198 = pneg %p121
        $region30: #{tpu_custom_call.1} parent=23 // pred_check_branch
          %200 = sbr.rel (%p198) target = $region32
        $region31: #{tpu_custom_call.1} parent=23 // pred_region
          %s201 = sand.u32 %s111, 1
          %s202 = scalar_lea.sflag [#allocation7], %s201
          %s203 = sand.u32 %s111, 1
          %s204 = smul.addr %s203, 256
          %s205 = scalar_lea.vmem [#allocation6], %s204
          %s206 = smul.u32 2, %s27
          %s208 = ssub.s32 4096, 4096
          %209 = vsyncadd %s202, %s208
          %s210 = smul.addr %s26, 32
          %s211 = sadd.s32 %s206, %s210
          %s212 = smul.addr %s211, 128
          %s213 = scalar_lea.hbm %s3, %s212
          %s214 = sshll.u32 %s205, 4
          %s215 = int_to_ptr.vmem [resolvable:$true] %s214
          %220 = dma.hbm_to_vmem [thread:$0]  %s213, 4096, %s215, %s202, 256, 256, 16
        $region32: #{tpu_custom_call.1} parent=23 // pred_fallthru
          _
      $region24: #{tpu_custom_call.1} parent=5 // pred_fallthru
        _
      %p221 = scmp.le.s32.totalorder 1, %s19
      %p222 = scmp.lt.s32.totalorder %s19, 3
      %p223 = pnand %p221, %p222
      %p224 = pneg %p223
      // Predicated region
      $region33: #{tpu_custom_call.1} parent=5 // pred_check
        _
      $region34: #{tpu_custom_call.1} parent=5 // pred_check_branch
        %226 = sbr.rel (%p223) target = $region36
      $region35: #{tpu_custom_call.1} parent=5 // pred_region
        %s227 = ssub.s32 %s19, 1
        %s228 = sand.u32 %s44, 1
        %s229 = scalar_lea.sflag [#allocation4], %s228
        %s230 = sand.u32 %s44, 1
        %s231 = smul.addr %s230, 8
        %s232 = scalar_lea.vmem [#allocation3], %s231
        // Predicated region
        $region37: #{tpu_custom_call.1} parent=35 // pred_check
          %p233 = pneg %p57
        $region38: #{tpu_custom_call.1} parent=35 // pred_check_branch
          %235 = sbr.rel (%p233) target = $region40
        $region39: #{tpu_custom_call.1} parent=35 // pred_region
          %236 = dma.done %s229, 128
        $region40: #{tpu_custom_call.1} parent=35 // pred_fallthru
          _
        %s237 = sand.u32 %s114, 1
        %s238 = scalar_lea.sflag [#allocation7], %s237
        %s239 = sand.u32 %s114, 1
        %s240 = smul.addr %s239, 256
        %s241 = scalar_lea.vmem [#allocation6], %s240
        // Predicated region
        $region41: #{tpu_custom_call.1} parent=35 // pred_check
          %p242 = pneg %p127
        $region42: #{tpu_custom_call.1} parent=35 // pred_check_branch
          %244 = sbr.rel (%p242) target = $region44
        $region43: #{tpu_custom_call.1} parent=35 // pred_region
          %245 = dma.done %s238, 4096
        $region44: #{tpu_custom_call.1} parent=35 // pred_fallthru
          _
        %s246 = sand.u32 %s44, 1
        %s247 = scalar_lea.sflag [#allocation4], %s246
        %s248 = sand.u32 %s44, 1
        %s249 = smul.addr %s248, 8
        %s250 = scalar_lea.vmem [#allocation3], %s249
        %p251 = pneg %p57
        %p252 = pneg %p54
        %p253 = pneg %p78
        %p254 = pneg %p75
        %p255 = pneg %p99
        %p256 = pneg %p96
        %s257 = sand.u32 %s114, 1
        %s258 = scalar_lea.sflag [#allocation7], %s257
        %s259 = sand.u32 %s114, 1
        %s260 = smul.addr %s259, 256
        %s261 = scalar_lea.vmem [#allocation6], %s260
        %p262 = pneg %p127
        %p263 = pneg %p124
        %p264 = pneg %p155
        %p265 = pneg %p152
        %s266 = sand.u32 %s142, 1
        %s267 = scalar_lea.sflag [#allocation5], %s266
        %s268 = sand.u32 %s142, 1
        %s269 = smul.addr %s268, 256
        %s270 = scalar_lea.vmem [#allocation8], %s269
        %s271 = smul.u32 2, %s29
        %s272 = smul.u32 2, %s29
        %p273 = scmp.eq.s32.totalorder %s29, 0
        // Predicated region
        $region45: #{tpu_custom_call.1} parent=35 // pred_check
          %p274 = pneg %p273
        $region46: #{tpu_custom_call.1} parent=35 // pred_check_branch
          %276 = sbr.rel (%p274) target = $region48
        $region47: #{tpu_custom_call.1} parent=35 // pred_region
          %v277 = vld [vmem:[%s232] sm:$0xff]
          %v278 = vld [vmem:[%s1] sm:$0xff]
          %v279 = vld [vmem:[%s2] sm:$0xff]
          %281 = vset.pattern.permute.xlu0 0
          %282 = vperm.xlu0 %281, %v279
          %v283 = vpop.permute.xlu0 %282
          %vm285 = vcmask 64512
          %v287 = vsel %vm285, %v278, 0
          %289 = vmatprep.subr.mxu0 0.0
          %290 = vmatpush1.msra.mxu0 %v277
          %291 = vmatprep.subr.mxu0 0.0
          %292 = vmatpush1.msra.mxu0 0.0
          %293 = vmatprep.subr.mxu0 0.0
          %294 = vmatpush1.msra.mxu0 0.0
          %295 = vmatprep.subr.mxu0 0.0
          %296 = vmatpush1.msra.mxu0 0.0
          %297 = vmatprep.subr.mxu0 0.0
          %298 = vmatpush1.msra.mxu0 0.0
          %299 = vmatprep.subr.mxu0 0.0
          %300 = vmatpush1.msra.mxu0 0.0
          %301 = vmatprep.subr.mxu0 0.0
          %302 = vmatpush1.msra.mxu0 0.0
          %303 = vmatprep.subr.mxu0 0.0
          %304 = vmatpush1.msra.mxu0 0.0
          %305 = vmatprep.subr.mxu0 0.0
          %306 = vmatpush1.msra.mxu0 0.0
          %307 = vmatprep.subr.mxu0 0.0
          %308 = vmatpush1.msra.mxu0 0.0
          %309 = vmatprep.subr.mxu0 0.0
          %310 = vmatpush1.msra.mxu0 0.0
          %311 = vmatprep.subr.mxu0 0.0
          %312 = vmatpush1.msra.mxu0 0.0
          %313 = vmatprep.subr.mxu0 0.0
          %314 = vmatpush1.msra.mxu0 0.0
          %315 = vmatprep.subr.mxu0 0.0
          %316 = vmatpush1.msra.mxu0 0.0
          %317 = vmatprep.subr.mxu0 0.0
          %318 = vmatpush1.msra.mxu0 0.0
          %319 = vmatprep.subr.mxu0 0.0
          %320 = vmatpush1.msra.mxu0 0.0
          %321 = vmatprep.subr.mxu0 0.0
          %322 = vmatpush1.msra.mxu0 0.0
          %323 = vmatprep.subr.mxu0 0.0
          %324 = vmatpush1.msra.mxu0 0.0
          %325 = vmatprep.subr.mxu0 0.0
          %326 = vmatpush1.msra.mxu0 0.0
          %327 = vmatprep.subr.mxu0 0.0
          %328 = vmatpush1.msra.mxu0 0.0
          %329 = vmatprep.subr.mxu0 0.0
          %330 = vmatpush1.msra.mxu0 0.0
          %331 = vmatprep.subr.mxu0 0.0
          %332 = vmatpush1.msra.mxu0 0.0
          %333 = vmatprep.subr.mxu0 0.0
          %334 = vmatpush1.msra.mxu0 0.0
          %335 = vmatprep.subr.mxu0 0.0
          %336 = vmatpush1.msra.mxu0 0.0
          %337 = vmatprep.subr.mxu0 0.0
          %338 = vmatpush1.msra.mxu0 0.0
          %339 = vmatprep.subr.mxu0 0.0
          %340 = vmatpush1.msra.mxu0 0.0
          %341 = vmatprep.subr.mxu0 0.0
          %342 = vmatpush1.msra.mxu0 0.0
          %343 = vmatprep.subr.mxu0 0.0
          %344 = vmatpush1.msra.mxu0 0.0
          %345 = vmatprep.subr.mxu0 0.0
          %346 = vmatpush1.msra.mxu0 0.0
          %347 = vmatprep.subr.mxu0 0.0
          %348 = vmatpush1.msra.mxu0 0.0
          %349 = vmatprep.subr.mxu0 0.0
          %350 = vmatpush1.msra.mxu0 0.0
          %351 = vmatprep.subr.mxu0 0.0
          %352 = vmatpush1.msra.mxu0 0.0
          %353 = vmatprep.mubr.f32.mxu0 0.0
          %354 = vmatmul.mubr.f32.gmra.mrb[0].mxu0 %v287
          %v355 = vpop.f32.mrb[0].mxu0
          %v356 = vadd.f32 %v283, %v355
          %v357 = vpop.f32.mrb[0].mxu0
          %358 = vdwg.mxu0
          %vm359 = vcmask 130048
          %360 = vst.msk [vmem:[#allocation2] sm:$0xff] %vm359, %v356
        $region48: #{tpu_custom_call.1} parent=35 // pred_fallthru
          _
        %v361 = vld [vmem:[#allocation2] sm:$0xff]
        %v362 = vlaneseq
        %v363 = vshrl.u32 %v362, 7
        %v364 = vsub.s32 0, %v363
        %v365 = vrot.slane %v361, %v364
        %367 = vbcast.lane.b32.xlu0 %v365, 256
        %v368 = vpop.permute.xlu0 %367
        %s370 = sor.u32 256, 8
        %371 = vbcast.lane.b32.xlu0 %v365, %s370
        %v372 = vpop.permute.xlu0 %371
        %v373 = vlaneseq
        %v374 = vshrl.u32 %v373, 7
        %v375 = vsub.s32 1, %v374
        %v376 = vrot.slane %v361, %v375
        %378 = vbcast.lane.b32.xlu0 %v376, 256
        %v379 = vpop.permute.xlu0 %378
        %s381 = sor.u32 256, 8
        %382 = vbcast.lane.b32.xlu0 %v376, %s381
        %v383 = vpop.permute.xlu0 %382
        %v384 = vlaneseq
        %v385 = vshrl.u32 %v384, 7
        %v386 = vsub.s32 2, %v385
        %v387 = vrot.slane %v361, %v386
        %389 = vbcast.lane.b32.xlu0 %v387, 256
        %v390 = vpop.permute.xlu0 %389
        %s392 = sor.u32 256, 8
        %393 = vbcast.lane.b32.xlu0 %v387, %s392
        %v394 = vpop.permute.xlu0 %393
        %v395 = vlaneseq
        %v396 = vshrl.u32 %v395, 7
        %v397 = vsub.s32 3, %v396
        %v398 = vrot.slane %v361, %v397
        %400 = vbcast.lane.b32.xlu0 %v398, 256
        %v401 = vpop.permute.xlu0 %400
        %s403 = sor.u32 256, 8
        %404 = vbcast.lane.b32.xlu0 %v398, %s403
        %v405 = vpop.permute.xlu0 %404
        %v406 = vlaneseq
        %v407 = vshrl.u32 %v406, 7
        %v408 = vsub.s32 4, %v407
        %v409 = vrot.slane %v361, %v408
        %411 = vbcast.lane.b32.xlu0 %v409, 256
        %v412 = vpop.permute.xlu0 %411
        %s414 = sor.u32 256, 8
        %415 = vbcast.lane.b32.xlu0 %v409, %s414
        %v416 = vpop.permute.xlu0 %415
        %v417 = vlaneseq
        %v418 = vshrl.u32 %v417, 7
        %v419 = vsub.s32 5, %v418
        %v420 = vrot.slane %v361, %v419
        %422 = vbcast.lane.b32.xlu0 %v420, 256
        %v423 = vpop.permute.xlu0 %422
        %s425 = sor.u32 256, 8
        %426 = vbcast.lane.b32.xlu0 %v420, %s425
        %v427 = vpop.permute.xlu0 %426
        %v428 = vlaneseq
        %v429 = vshrl.u32 %v428, 7
        %v430 = vsub.s32 6, %v429
        %v431 = vrot.slane %v361, %v430
        %433 = vbcast.lane.b32.xlu0 %v431, 256
        %v434 = vpop.permute.xlu0 %433
        %s436 = sor.u32 256, 8
        %437 = vbcast.lane.b32.xlu0 %v431, %s436
        %v438 = vpop.permute.xlu0 %437
        %v439 = vlaneseq
        %v440 = vshrl.u32 %v439, 7
        %v441 = vsub.s32 7, %v440
        %v442 = vrot.slane %v361, %v441
        %444 = vbcast.lane.b32.xlu0 %v442, 256
        %v445 = vpop.permute.xlu0 %444
        %s447 = sor.u32 256, 8
        %448 = vbcast.lane.b32.xlu0 %v442, %s447
        %v449 = vpop.permute.xlu0 %448
        %v450 = vld [vmem:[%s241] sm:$0xff]
        %v451 = vld [vmem:[%s241 + $0x8] sm:$0xff]
        %v452 = vld [vmem:[%s241 + $0x10] sm:$0xff]
        %v453 = vld [vmem:[%s241 + $0x18] sm:$0xff]
        %v454 = vld [vmem:[%s241 + $0x20] sm:$0xff]
        %v455 = vld [vmem:[%s241 + $0x28] sm:$0xff]
        %v456 = vld [vmem:[%s241 + $0x30] sm:$0xff]
        %v457 = vld [vmem:[%s241 + $0x38] sm:$0xff]
        %v458 = vld [vmem:[%s241 + $0x40] sm:$0xff]
        %v459 = vld [vmem:[%s241 + $0x48] sm:$0xff]
        %v460 = vld [vmem:[%s241 + $0x50] sm:$0xff]
        %v461 = vld [vmem:[%s241 + $0x58] sm:$0xff]
        %v462 = vld [vmem:[%s241 + $0x60] sm:$0xff]
        %v463 = vld [vmem:[%s241 + $0x68] sm:$0xff]
        %v464 = vld [vmem:[%s241 + $0x70] sm:$0xff]
        %v465 = vld [vmem:[%s241 + $0x78] sm:$0xff]
        %v466 = vld [vmem:[%s241 + $0x80] sm:$0xff]
        %v467 = vld [vmem:[%s241 + $0x88] sm:$0xff]
        %v468 = vld [vmem:[%s241 + $0x90] sm:$0xff]
        %v469 = vld [vmem:[%s241 + $0x98] sm:$0xff]
        %v470 = vld [vmem:[%s241 + $0xa0] sm:$0xff]
        %v471 = vld [vmem:[%s241 + $0xa8] sm:$0xff]
        %v472 = vld [vmem:[%s241 + $0xb0] sm:$0xff]
        %v473 = vld [vmem:[%s241 + $0xb8] sm:$0xff]
        %v474 = vld [vmem:[%s241 + $0xc0] sm:$0xff]
        %v475 = vld [vmem:[%s241 + $0xc8] sm:$0xff]
        %v476 = vld [vmem:[%s241 + $0xd0] sm:$0xff]
        %v477 = vld [vmem:[%s241 + $0xd8] sm:$0xff]
        %v478 = vld [vmem:[%s241 + $0xe0] sm:$0xff]
        %v479 = vld [vmem:[%s241 + $0xe8] sm:$0xff]
        %v480 = vld [vmem:[%s241 + $0xf0] sm:$0xff]
        %v481 = vld [vmem:[%s241 + $0xf8] sm:$0xff]
        %v482 = vmul.f32 %v450, %v368
        %v483 = vmul.f32 %v451, %v368
        %v484 = vmul.f32 %v452, %v372
        %v485 = vmul.f32 %v453, %v372
        %v486 = vmul.f32 %v454, %v379
        %v487 = vmul.f32 %v455, %v379
        %v488 = vmul.f32 %v456, %v383
        %v489 = vmul.f32 %v457, %v383
        %v490 = vmul.f32 %v458, %v390
        %v491 = vmul.f32 %v459, %v390
        %v492 = vmul.f32 %v460, %v394
        %v493 = vmul.f32 %v461, %v394
        %v494 = vmul.f32 %v462, %v401
        %v495 = vmul.f32 %v463, %v401
        %v496 = vmul.f32 %v464, %v405
        %v497 = vmul.f32 %v465, %v405
        %v498 = vmul.f32 %v466, %v412
        %v499 = vmul.f32 %v467, %v412
        %v500 = vmul.f32 %v468, %v416
        %v501 = vmul.f32 %v469, %v416
        %v502 = vmul.f32 %v470, %v423
        %v503 = vmul.f32 %v471, %v423
        %v504 = vmul.f32 %v472, %v427
        %v505 = vmul.f32 %v473, %v427
        %v506 = vmul.f32 %v474, %v434
        %v507 = vmul.f32 %v475, %v434
        %v508 = vmul.f32 %v476, %v438
        %v509 = vmul.f32 %v477, %v438
        %v510 = vmul.f32 %v478, %v445
        %v511 = vmul.f32 %v479, %v445
        %v512 = vmul.f32 %v480, %v449
        %v513 = vmul.f32 %v481, %v449
        %v514 = vadd.f32 %v482, %v368
        %v515 = vadd.f32 %v483, %v368
        %v516 = vadd.f32 %v484, %v372
        %v517 = vadd.f32 %v485, %v372
        %v518 = vadd.f32 %v486, %v379
        %v519 = vadd.f32 %v487, %v379
        %v520 = vadd.f32 %v488, %v383
        %v521 = vadd.f32 %v489, %v383
        %v522 = vadd.f32 %v490, %v390
        %v523 = vadd.f32 %v491, %v390
        %v524 = vadd.f32 %v492, %v394
        %v525 = vadd.f32 %v493, %v394
        %v526 = vadd.f32 %v494, %v401
        %v527 = vadd.f32 %v495, %v401
        %v528 = vadd.f32 %v496, %v405
        %v529 = vadd.f32 %v497, %v405
        %v530 = vadd.f32 %v498, %v412
        %v531 = vadd.f32 %v499, %v412
        %v532 = vadd.f32 %v500, %v416
        %v533 = vadd.f32 %v501, %v416
        %v534 = vadd.f32 %v502, %v423
        %v535 = vadd.f32 %v503, %v423
        %v536 = vadd.f32 %v504, %v427
        %v537 = vadd.f32 %v505, %v427
        %v538 = vadd.f32 %v506, %v434
        %v539 = vadd.f32 %v507, %v434
        %v540 = vadd.f32 %v508, %v438
        %v541 = vadd.f32 %v509, %v438
        %v542 = vadd.f32 %v510, %v445
        %v543 = vadd.f32 %v511, %v445
        %v544 = vadd.f32 %v512, %v449
        %v545 = vadd.f32 %v513, %v449
        %546 = vst [vmem:[%s270] sm:$0xff] %v514
        %547 = vst [vmem:[%s270 + $0x8] sm:$0xff] %v515
        %548 = vst [vmem:[%s270 + $0x10] sm:$0xff] %v516
        %549 = vst [vmem:[%s270 + $0x18] sm:$0xff] %v517
        %550 = vst [vmem:[%s270 + $0x20] sm:$0xff] %v518
        %551 = vst [vmem:[%s270 + $0x28] sm:$0xff] %v519
        %552 = vst [vmem:[%s270 + $0x30] sm:$0xff] %v520
        %553 = vst [vmem:[%s270 + $0x38] sm:$0xff] %v521
        %554 = vst [vmem:[%s270 + $0x40] sm:$0xff] %v522
        %555 = vst [vmem:[%s270 + $0x48] sm:$0xff] %v523
        %556 = vst [vmem:[%s270 + $0x50] sm:$0xff] %v524
        %557 = vst [vmem:[%s270 + $0x58] sm:$0xff] %v525
        %558 = vst [vmem:[%s270 + $0x60] sm:$0xff] %v526
        %559 = vst [vmem:[%s270 + $0x68] sm:$0xff] %v527
        %560 = vst [vmem:[%s270 + $0x70] sm:$0xff] %v528
        %561 = vst [vmem:[%s270 + $0x78] sm:$0xff] %v529
        %562 = vst [vmem:[%s270 + $0x80] sm:$0xff] %v530
        %563 = vst [vmem:[%s270 + $0x88] sm:$0xff] %v531
        %564 = vst [vmem:[%s270 + $0x90] sm:$0xff] %v532
        %565 = vst [vmem:[%s270 + $0x98] sm:$0xff] %v533
        %566 = vst [vmem:[%s270 + $0xa0] sm:$0xff] %v534
        %567 = vst [vmem:[%s270 + $0xa8] sm:$0xff] %v535
        %568 = vst [vmem:[%s270 + $0xb0] sm:$0xff] %v536
        %569 = vst [vmem:[%s270 + $0xb8] sm:$0xff] %v537
        %570 = vst [vmem:[%s270 + $0xc0] sm:$0xff] %v538
        %571 = vst [vmem:[%s270 + $0xc8] sm:$0xff] %v539
        %572 = vst [vmem:[%s270 + $0xd0] sm:$0xff] %v540
        %573 = vst [vmem:[%s270 + $0xd8] sm:$0xff] %v541
        %574 = vst [vmem:[%s270 + $0xe0] sm:$0xff] %v542
        %575 = vst [vmem:[%s270 + $0xe8] sm:$0xff] %v543
        %576 = vst [vmem:[%s270 + $0xf0] sm:$0xff] %v544
        %577 = vst [vmem:[%s270 + $0xf8] sm:$0xff] %v545
        %s578 = sand.u32 %s142, 1
        %s579 = scalar_lea.sflag [#allocation5], %s578
        %s580 = sand.u32 %s142, 1
        %s581 = smul.addr %s580, 256
        %s582 = scalar_lea.vmem [#allocation8], %s581
        // Predicated region
        $region49: #{tpu_custom_call.1} parent=35 // pred_check
          %p583 = pneg %p152
        $region50: #{tpu_custom_call.1} parent=35 // pred_check_branch
          %585 = sbr.rel (%p583) target = $region52
        $region51: #{tpu_custom_call.1} parent=35 // pred_region
          %s586 = smul.u32 2, %s29
          %s588 = ssub.s32 4096, 4096
          %589 = vsyncadd %s579, %s588
          %s590 = smul.addr %s28, 32
          %s591 = sadd.s32 %s586, %s590
          %s592 = smul.addr %s591, 128
          %s593 = scalar_lea.hbm %s4, %s592
          %s594 = sshll.u32 %s582, 4
          %s595 = int_to_ptr.vmem [resolvable:$true] %s594
          %600 = dma.vmem_to_hbm [thread:$0]  %s595, 4096, %s593, %s579, 256, 256, 16
        $region52: #{tpu_custom_call.1} parent=35 // pred_fallthru
          _
      $region36: #{tpu_custom_call.1} parent=5 // pred_fallthru
        _
      %p601 = scmp.le.s32.totalorder 2, %s19
      // Predicated region
      $region53: #{tpu_custom_call.1} parent=5 // pred_check
        %p602 = pneg %p601
      $region54: #{tpu_custom_call.1} parent=5 // pred_check_branch
        %604 = sbr.rel (%p602) target = $region56
      $region55: #{tpu_custom_call.1} parent=5 // pred_region
        %s605 = ssub.s32 %s19, 2
        // Predicated region
        $region57: #{tpu_custom_call.1} parent=55 // pred_check
          %p606 = pneg %p158
        $region58: #{tpu_custom_call.1} parent=55 // pred_check_branch
          %608 = sbr.rel (%p606) target = $region60
        $region59: #{tpu_custom_call.1} parent=55 // pred_region
          %s609 = sand.u32 %s143, 1
          %s610 = scalar_lea.sflag [#allocation5], %s609
          %s611 = sand.u32 %s143, 1
          %s612 = smul.addr %s611, 256
          %s613 = scalar_lea.vmem [#allocation8], %s612
          %614 = dma.done %s610, 4096
        $region60: #{tpu_custom_call.1} parent=55 // pred_fallthru
          _
      $region56: #{tpu_custom_call.1} parent=5 // pred_fallthru
        _
    $region6: #{tpu_custom_call.1} parent=1 // loop_footer
      %s23 = sadd.s32 1, %s19
    $region7: #{tpu_custom_call.1} parent=1 // loop_footer_branch
      %18 = sbr.rel target = $region3
    $region8: #{tpu_custom_call.1} parent=1 // loop_exit
      _
    %615 = vsyncpa [#allocation4], 1
    %s616 = scalar_lea.sflag [#allocation4], 1
    %617 = vsyncpa %s616, 1
    %618 = vsyncpa [#allocation7], 1
    %s619 = scalar_lea.sflag [#allocation7], 1
    %620 = vsyncpa %s619, 1
    %621 = vsyncpa [#allocation5], 1
    %s622 = scalar_lea.sflag [#allocation5], 1
    %623 = vsyncpa %s622, 1

</llo_original>
